<compile_context>
chip_gen: v7x
topology: tpu7x:2x2x1
jax: 0.10.0
libtpu: 0.0.40
codegen_flags: <defaults>
</compile_context>

<pallas_src>
import functools
import math

import jax
import jax.numpy as jnp
from jax import lax
from jax.experimental import pallas as pl
from jax.experimental.pallas import tpu as pltpu


def _round_up(x, m):
    return (x + m - 1) // m * m


def _mmr_tile_kernel(t_ref, im_ref, mdc_ref, mdr_ref, out_ref, *, bj, image_resident):
    """One (Bi, Bj) tile of the margin sum.

    t_ref   : (Bi, D)      normalized text rows for row-block i
    im_ref  : (P, D)       whole image matrix (resident path)  OR  (Bj, D) streamed col block
    mdc_ref : (Bi, 1)      margin - diag for the text rows   (padded rows -> -1e9)
    mdr_ref : (1, Bj)      margin - diag for the image rows  (padded rows -> -1e9)
    out_ref : (1, 8, 128)  lane-dense partial-sum accumulator, resident across j
    """
    j = pl.program_id(1)

    @pl.when(j == 0)
    def _():
        out_ref[...] = jnp.zeros_like(out_ref)

    if image_resident:
        # Whole image matrix lives in VMEM; pick this step's column block with an aligned slice.
        col0 = pl.multiple_of(j * bj, 128)
        im = im_ref[pl.ds(col0, bj), :]
    else:
        im = im_ref[...]

    bi = t_ref.shape[0]

    # MXU matmul contracting the feature dim of both operands (no transpose materialized).
    x = lax.dot_general(
        t_ref[...], im,
        dimension_numbers=(((1,), (1,)), ((), ())),
        preferred_element_type=jnp.float32)                                   # (Bi, Bj) f32

    # m1: relu(margin - x[i,i] + x[i,j]);  m2: relu(margin - x[j,j] + x[i,j])
    contrib = (jnp.maximum(mdc_ref[...] + x, 0.0)
               + jnp.maximum(mdr_ref[...] + x, 0.0))                          # (Bi, Bj)

    # Lane-dense partial reduction (VPU only, no per-step cross-lane XLU tree):
    #   1) fold 128-wide lane groups with vector adds,
    folded = contrib[:, 0:128]
    for g in range(1, bj // 128):
        folded = folded + contrib[:, g * 128:(g + 1) * 128]                   # (Bi, 128)
    #   2) fold sublane groups (vreg-wise adds; the reshape is layout-free),
    part = jnp.sum(folded.reshape(bi // 8, 8, 128), axis=0)                   # (8, 128)
    #   3) accumulate into the resident lane-dense output block.
    out_ref[...] += part[None, :, :]


def max_margin_ranking_loss(image_features, text_features, weight=None, *,
                            margin=0.2, fix_norm=True,
                            use_bf16_matmul=None,
                            force_stream=False,
                            resident_image_bytes=16 * 1024 * 1024):
    """JAX/Pallas equivalent of MaxMarginRankingLoss.forward (world_size=1)."""
    # TODO(synk): gather_features for world_size > 1 (distributed all-gather) is not
    # implemented; with world_size=1 it is an identity, which is what we implement.
    # `weight` is accepted but unused, exactly like the original forward pass.
    del weight

    n, d = text_features.shape
    assert image_features.shape == (n, d)
    margin = float(margin)
    if fix_norm:
        assert n > 1, "fix_norm=True needs n >= 2 (mean over 2*n*(n-1) off-diagonal terms)"
    eps = 1e-8

    # ---- hoisted O(N*D) prep (pure JAX): row L2-normalize + elementwise diagonal ----
    t = text_features.astype(jnp.float32)
    im = image_features.astype(jnp.float32)
    t_norm = t / jnp.maximum(jnp.linalg.norm(t, axis=1, keepdims=True), eps)
    i_norm = im / jnp.maximum(jnp.linalg.norm(im, axis=1, keepdims=True), eps)

    # MXU operand dtype: bf16 automatically for bf16 inputs, opt-in for f32 inputs.
    if use_bf16_matmul is None:
        use_bf16_matmul = (text_features.dtype == jnp.bfloat16
                           and image_features.dtype == jnp.bfloat16)
    feed_dtype = jnp.bfloat16 if use_bf16_matmul else jnp.float32
    # TODO(synk): optional fp8 operand feed on v7x (MXU fp8) once accuracy budget allows.
    t_feed = t_norm.astype(feed_dtype)
    i_feed = i_norm.astype(feed_dtype)

    # diag(x) as an elementwise row dot of the same operands that feed the MXU.
    diag = jnp.sum(t_feed.astype(jnp.float32) * i_feed.astype(jnp.float32), axis=1)   # (N,)
    md = margin - diag                                                                # (N,)

    # ---- tile selection (decoupled Bi / Bj, VMEM-budgeted) ----
    fb = 2 if feed_dtype == jnp.bfloat16 else 4
    row_bytes = d * fb
    p128 = _round_up(n, 128)

    bj = 256 if p128 >= 256 else 128          # 256 fills the v6e/v7x MXU; 128 for tiny N

    budget = 26 * 1024 * 1024                 # operand working set, well under the 48 MiB limit
    p_worst = _round_up(n, 1024)              # upper bound on padded P (before exact padding)
    # Fully VMEM-resident image matrix when it fits (x2 for the pipeline's buffer pair).
    image_resident = (not force_stream) and (2 * p_worst * row_bytes <= resident_image_bytes)
    if image_resident:
        avail = budget - 2 * p_worst * row_bytes
    else:
        avail = budget - 3 * bj * row_bytes   # Buffered(3) streamed image blocks
    bi_budget = max(128, avail // (2 * row_bytes))   # text row block is double-buffered
    bi = 128
    for cand in (1024, 512, 256, 128):
        if cand <= bi_budget and cand <= p128:
            bi = cand
            break

    # Pad N so both tile sizes divide it exactly (pads are zero rows / relu'd-away margins).
    p = _round_up(n, (bi * bj) // math.gcd(bi, bj))
    n_pad = p - n
    grid_i = p // bi          # NOTE(v7x): an even grid_i lets both TensorCores share row blocks.
    grid_j = p // bj

    t_p = jnp.pad(t_feed, ((0, n_pad), (0, 0)))
    i_p = jnp.pad(i_feed, ((0, n_pad), (0, 0)))
    md_p = jnp.pad(md, (0, n_pad), constant_values=-1e9)
    mdc = md_p[:, None]                                                               # (P, 1)
    mdr = md_p[None, :]                                                               # (1, P)

    if image_resident:
        # Single fetch of the whole image matrix; sliced per j inside the kernel.
        image_spec = pl.BlockSpec((p, d), lambda i, j: (0, 0))
    else:
        if hasattr(pl, "Buffered"):
            image_spec = pl.BlockSpec((bj, d), lambda i, j: (j, 0),
                                      pipeline_mode=pl.Buffered(3))
        else:  # older JAX without pipeline_mode multi-buffering
            image_spec = pl.BlockSpec((bj, d), lambda i, j: (j, 0))

    kernel = functools.partial(_mmr_tile_kernel, bj=bj, image_resident=image_resident)

    partial_sums = pl.pallas_call(
        kernel,
        out_shape=jax.ShapeDtypeStruct((grid_i, 8, 128), jnp.float32),
        grid_spec=pltpu.PrefetchScalarGridSpec(
            num_scalar_prefetch=0,
            grid=(grid_i, grid_j),
            in_specs=[
                pl.BlockSpec((bi, d), lambda i, j: (i, 0)),    # text rows (row block)
                image_spec,                                    # image rows (resident / streamed)
                pl.BlockSpec((bi, 1), lambda i, j: (i, 0)),    # margin - diag, column form
                pl.BlockSpec((1, bj), lambda i, j: (0, j)),    # margin - diag, row form
            ],
            out_specs=pl.BlockSpec((1, 8, 128), lambda i, j: (i, 0, 0)),
        ),
        compiler_params=pltpu.CompilerParams(
            dimension_semantics=("parallel", "arbitrary"),
            vmem_limit_bytes=48 * 1024 * 1024,
        ),
    )(t_p, i_p, mdc, mdr)

    # Single cross-lane reduction, once, in the wrapper.
    total = jnp.sum(partial_sums)     # sum of (m1 + m2) over the padded P x P grid

    # Remove the padded-row/column contributions exactly: every surviving padded term equals
    # relu(margin - diag[k]) for a valid k, counted 2 * n_pad times in total.
    total = total - 2.0 * n_pad * jnp.sum(jnp.maximum(md, 0.0))

    if fix_norm:
        # Each of the 2*N diagonal (i == j) terms equals relu(margin); subtract analytically.
        total = total - 2.0 * n * max(margin, 0.0)
        loss = total / jnp.float32(2 * n * (n - 1))
    else:
        loss = total / jnp.float32(2 * n * n)

    return {"loss": loss, "max_margin_loss": loss}


def _reference_loss(image_features, text_features, margin=0.2, fix_norm=True):
    """Pure-JAX reference mirroring the PyTorch module."""
    eps = 1e-8
    a = text_features.astype(jnp.float32)
    b = image_features.astype(jnp.float32)
    a = a / jnp.maximum(jnp.linalg.norm(a, axis=1, keepdims=True), eps)
    b = b / jnp.maximum(jnp.linalg.norm(b, axis=1, keepdims=True), eps)
    x = a @ b.T
    n = x.shape[0]
    x1 = jnp.broadcast_to(jnp.diag(x)[:, None], (n, n)).reshape(-1, 1)
    x1 = jnp.concatenate([x1, x1], axis=0)
    x2 = jnp.concatenate([x.reshape(-1, 1), x.T.reshape(-1, 1)], axis=0)
    mm = jnp.maximum(margin - (x1 - x2), 0.0)
    if fix_norm:
        keep = 1.0 - jnp.eye(n)
        keep_all = jnp.concatenate([keep.reshape(-1, 1), keep.T.reshape(-1, 1)], axis=0)
        mask = keep_all > 0
        return jnp.sum(jnp.where(mask, mm, 0.0)) / jnp.sum(mask)
    return jnp.mean(mm)


if __name__ == "__main__":
    key = jax.random.PRNGKey(0)
    k1, k2, k3, k4, k5, k6 = jax.random.split(key, 6)

    # Case 1: tiny batch (N=8, D=32) — single padded 128x128 tile, resident-image path.
    N, D = 8, 32
    image_features = jax.random.normal(k1, (N, D), dtype=jnp.float32)
    text_features = jax.random.normal(k2, (N, D), dtype=jnp.float32)
    out = max_margin_ranking_loss(image_features, text_features, margin=0.2, fix_norm=True)
    loss = jax.block_until_ready(out["loss"])
    ref = _reference_loss(image_features, text_features, margin=0.2, fix_norm=True)
    assert jnp.allclose(loss, ref, atol=1e-3, rtol=1e-3), (float(loss), float(ref))

    # Case 2: N=20 (pads to 128) — exercises the padding correction, both fix_norm settings.
    N2, D2 = 20, 48
    image_features2 = jax.random.normal(k3, (N2, D2), dtype=jnp.float32)
    text_features2 = jax.random.normal(k4, (N2, D2), dtype=jnp.float32)
    for fix_norm in (True, False):
        out2 = max_margin_ranking_loss(image_features2, text_features2,
                                       margin=0.2, fix_norm=fix_norm)
        loss2 = jax.block_until_ready(out2["loss"])
        ref2 = _reference_loss(image_features2, text_features2, margin=0.2, fix_norm=fix_norm)
        assert jnp.allclose(loss2, ref2, atol=1e-3, rtol=1e-3), \
            (fix_norm, float(loss2), float(ref2))

    # Case 3: N=300 (pads to 512, 2x2 grid of 256-tiles) — resident AND streamed image paths.
    N3, D3 = 300, 64
    image_features3 = jax.random.normal(k5, (N3, D3), dtype=jnp.float32)
    text_features3 = jax.random.normal(k6, (N3, D3), dtype=jnp.float32)
    ref3 = _reference_loss(image_features3, text_features3, margin=0.2, fix_norm=True)
    for force_stream in (False, True):
        out3 = max_margin_ranking_loss(image_features3, text_features3, margin=0.2,
                                       fix_norm=True, force_stream=force_stream)
        loss3 = jax.block_until_ready(out3["loss"])
        assert jnp.allclose(loss3, ref3, atol=1e-3, rtol=1e-3), \
            (force_stream, float(loss3), float(ref3))

    # Case 4: bf16 inputs -> bf16 MXU feed (looser tolerance vs the f32 reference).
    out4 = max_margin_ranking_loss(image_features3.astype(jnp.bfloat16),
                                   text_features3.astype(jnp.bfloat16),
                                   margin=0.2, fix_norm=True)
    loss4 = jax.block_until_ready(out4["loss"])
    assert jnp.allclose(loss4, ref3, atol=5e-2, rtol=5e-2), (float(loss4), float(ref3))

    print("KERNEL_OK")
</pallas_src>

<mosaic_0001>
module attributes {stable_mosaic.version = 11 : i64} {
  func.func @_mmr_tile_kernel(%arg0: i32, %arg1: i32, %arg2: memref<128x32xf32, #tpu.memory_space<vmem>>, %arg3: memref<128x32xf32, #tpu.memory_space<vmem>>, %arg4: memref<128x1xf32, #tpu.memory_space<vmem>>, %arg5: memref<1x128xf32, #tpu.memory_space<vmem>>, %arg6: memref<1x8x128xf32, #tpu.memory_space<vmem>>) attributes {dimension_semantics = [#tpu.dimension_semantics<parallel>, #tpu.dimension_semantics<arbitrary>], iteration_bounds = array<i64: 1, 1>, scalar_prefetch = 0 : i64, scratch_operands = 0 : i64, tpu.core_type = #tpu.core_type<tc>, window_params = [{transform_indices = @transform_0, window_bounds = array<i64: 128, 32>}, {pipeline_mode = #tpu.pipeline_mode<synchronous>, transform_indices = @transform_1, window_bounds = array<i64: 128, 32>}, {transform_indices = @transform_2, window_bounds = array<i64: 128, 1>}, {transform_indices = @transform_3, window_bounds = array<i64: 1, 128>}, {transform_indices = @transform_4, window_bounds = array<i64: 1, 8, 128>}]} {
    %c0_i32 = arith.constant 0 : i32
    %0 = arith.cmpi eq, %arg1, %c0_i32 : i32
    %1 = arith.extui %0 : i1 to i32
    %c0_i32_0 = arith.constant 0 : i32
    %2 = arith.cmpi ne, %1, %c0_i32_0 : i32
    scf.if %2 {
      %cst_16 = arith.constant 0.000000e+00 : f32
      %26 = vector.broadcast %cst_16 : f32 to vector<1x8x128xf32>
      %c0_17 = arith.constant 0 : index
      %c0_18 = arith.constant 0 : index
      %c0_19 = arith.constant 0 : index
      %27 = vector.load %arg6[%c0_17, %c0_18, %c0_19] : memref<1x8x128xf32, #tpu.memory_space<vmem>>, vector<1x8x128xf32>
      tpu.vector_store %arg6[%c0_17, %c0_18, %c0_19], %26 {strides = array<i32>} : memref<1x8x128xf32, #tpu.memory_space<vmem>>, vector<1x8x128xf32>,
    } else {
    }
    %c128_i32 = arith.constant 128 : i32
    %3 = arith.muli %arg1, %c128_i32 : i32
    %4 = tpu.assume_multiple %3, 128 : i32
    %5 = arith.index_cast %4 : i32 to index
    %c0 = arith.constant 0 : index
    %6 = vector.load %arg3[%5, %c0] : memref<128x32xf32, #tpu.memory_space<vmem>>, vector<128x32xf32>
    %c0_1 = arith.constant 0 : index
    %c0_2 = arith.constant 0 : index
    %7 = vector.load %arg2[%c0_1, %c0_2] : memref<128x32xf32, #tpu.memory_space<vmem>>, vector<128x32xf32>
    %cst = arith.constant dense<0.000000e+00> : vector<128x128xf32>
    %8 = tpu.matmul %7, %6, %cst {dimension_numbers = #tpu.dot_dimension_numbers<[1], [1], [0], [0], [0, 0, 1, 0], [], []>} : vector<128x32xf32>, vector<128x32xf32>, vector<128x128xf32> -> vector<128x128xf32>
    %c0_3 = arith.constant 0 : index
    %c0_4 = arith.constant 0 : index
    %9 = vector.load %arg4[%c0_3, %c0_4] : memref<128x1xf32, #tpu.memory_space<vmem>>, vector<128x1xf32>
    %10 = vector.broadcast %9 : vector<128x1xf32> to vector<128x128xf32>
    %11 = arith.addf %10, %8 : vector<128x128xf32>
    %cst_5 = arith.constant 0.000000e+00 : f32
    %12 = vector.broadcast %cst_5 : f32 to vector<128x128xf32>
    %13 = arith.maximumf %11, %12 : vector<128x128xf32>
    %c0_6 = arith.constant 0 : index
    %c0_7 = arith.constant 0 : index
    %14 = vector.load %arg5[%c0_6, %c0_7] : memref<1x128xf32, #tpu.memory_space<vmem>>, vector<1x128xf32>
    %15 = vector.broadcast %14 : vector<1x128xf32> to vector<128x128xf32>
    %16 = arith.addf %15, %8 : vector<128x128xf32>
    %cst_8 = arith.constant 0.000000e+00 : f32
    %17 = vector.broadcast %cst_8 : f32 to vector<128x128xf32>
    %18 = arith.maximumf %16, %17 : vector<128x128xf32>
    %19 = arith.addf %13, %18 : vector<128x128xf32>
    %20 = vector.shape_cast %19 : vector<128x128xf32> to vector<16x8x128xf32>
    %cst_9 = arith.constant dense<0.000000e+00> : vector<8x128xf32>
    %21 = vector.multi_reduction <add>, %20, %cst_9 [0] : vector<16x8x128xf32> to vector<8x128xf32>
    %c0_10 = arith.constant 0 : index
    %c0_11 = arith.constant 0 : index
    %c0_12 = arith.constant 0 : index
    %22 = vector.load %arg6[%c0_10, %c0_11, %c0_12] : memref<1x8x128xf32, #tpu.memory_space<vmem>>, vector<1x8x128xf32>
    %23 = vector.shape_cast %21 : vector<8x128xf32> to vector<1x8x128xf32>
    %24 = arith.addf %22, %23 : vector<1x8x128xf32>
    %c0_13 = arith.constant 0 : index
    %c0_14 = arith.constant 0 : index
    %c0_15 = arith.constant 0 : index
    %25 = vector.load %arg6[%c0_13, %c0_14, %c0_15] : memref<1x8x128xf32, #tpu.memory_space<vmem>>, vector<1x8x128xf32>
    tpu.vector_store %arg6[%c0_13, %c0_14, %c0_15], %24 {strides = array<i32>} : memref<1x8x128xf32, #tpu.memory_space<vmem>>, vector<1x8x128xf32>,
    return
  }
  func.func @transform_0(%arg0: i32, %arg1: i32) -> (i32, i32) {
    %c0_i32 = arith.constant 0 : i32
    %c0_i32_0 = arith.constant 0 : i32
    return %arg0, %c0_i32 : i32, i32
  }
  func.func @transform_1(%arg0: i32, %arg1: i32) -> (i32, i32) {
    %c0_i32 = arith.constant 0 : i32
    %c0_i32_0 = arith.constant 0 : i32
    %c0_i32_1 = arith.constant 0 : i32
    return %c0_i32, %c0_i32_0 : i32, i32
  }
  func.func @transform_2(%arg0: i32, %arg1: i32) -> (i32, i32) {
    %c0_i32 = arith.constant 0 : i32
    %c0_i32_0 = arith.constant 0 : i32
    return %arg0, %c0_i32 : i32, i32
  }
  func.func @transform_3(%arg0: i32, %arg1: i32) -> (i32, i32) {
    %c0_i32 = arith.constant 0 : i32
    %c0_i32_0 = arith.constant 0 : i32
    return %c0_i32, %arg1 : i32, i32
  }
  func.func @transform_4(%arg0: i32, %arg1: i32) -> (i32, i32, i32) {
    %c0_i32 = arith.constant 0 : i32
    %c0_i32_0 = arith.constant 0 : i32
    %c0_i32_1 = arith.constant 0 : i32
    return %arg0, %c0_i32, %c0_i32_0 : i32, i32, i32
  }
}

</mosaic_0001>

<llo_original>
// kernel: tpu_custom_call.1
$region0: #{tpu_custom_call.1}
  #allocation0 [shape = 'u32[]', space=smem, size = 0x4, offset = 0x4, fixed_abs, tag = 'smem constant byte address 0x4 - core index']
  #allocation1 [shape = 'u32[144,128]{1,0:T(1,128)}', space=vmem, size = 0x12000, scoped, tag = 'internal scratch']
  %s0 = inlined_call_operand.vmem [shape: f32[128,32], index: 0, kind: input, shape index: {}]
  %s1 = inlined_call_operand.vmem [shape: f32[128,32], index: 1, kind: input, shape index: {}]
  %s2 = inlined_call_operand.vmem [shape: f32[128,1], index: 2, kind: input, shape index: {}]
  %s3 = inlined_call_operand.vmem [shape: f32[1,128], index: 3, kind: input, shape index: {}]
  %s4 = inlined_call_operand.hbm [shape: f32[1,8,128], index: 4, kind: output, shape index: {}]
  %s5 = sld [smem:[#allocation0]]
  $region30: #{tpu_custom_call.1} parent=0
    _
  %s7 = ssub.s32 1, %s5
  %s8 = scalar_select 0, %s7, %s5
  $region1: #{tpu_custom_call.1} parent=0
    #allocation2 [shape = 'u8[4096]{0}', space=vmem, size = 0x1000, scoped, tag = 'output window, operand 0, single buffered']
    #allocation3 [shape = 's32[1]{0}', space=sflag, size = 0x4, scoped, tag = 'scoped memory for tpu_custom_call.1']
    %9 = vsyncpa [#allocation3], 0
    // Predicated region
    $region2: #{tpu_custom_call.1} parent=1 // pred_check
      _
    $region3: #{tpu_custom_call.1} parent=1 // pred_check_branch
      %11 = sbr.rel (0) target = $region5
    $region4: #{tpu_custom_call.1} parent=1 // pred_region
      _
    $region5: #{tpu_custom_call.1} parent=1 // pred_fallthru
      _
    // Predicated region
    $region6: #{tpu_custom_call.1} parent=1 // pred_check
      _
    $region7: #{tpu_custom_call.1} parent=1 // pred_check_branch
      %13 = sbr.rel (0) target = $region9
    $region8: #{tpu_custom_call.1} parent=1 // pred_region
      _
    $region9: #{tpu_custom_call.1} parent=1 // pred_fallthru
      _
    // Predicated region
    $region10: #{tpu_custom_call.1} parent=1 // pred_check
      _
    $region11: #{tpu_custom_call.1} parent=1 // pred_check_branch
      %15 = sbr.rel (0) target = $region13
    $region12: #{tpu_custom_call.1} parent=1 // pred_region
      _
    $region13: #{tpu_custom_call.1} parent=1 // pred_fallthru
      _
    // Predicated region
    $region14: #{tpu_custom_call.1} parent=1 // pred_check
      _
    $region15: #{tpu_custom_call.1} parent=1 // pred_check_branch
      %17 = sbr.rel (0) target = $region17
    $region16: #{tpu_custom_call.1} parent=1 // pred_region
      _
    $region17: #{tpu_custom_call.1} parent=1 // pred_fallthru
      _
    %p18 = scmp.eq.s32.totalorder 0, 0
    // Predicated region
    $region18: #{tpu_custom_call.1} parent=1 // pred_check
      %p19 = pneg %p18
    $region19: #{tpu_custom_call.1} parent=1 // pred_check_branch
      %21 = sbr.rel (%p19) target = $region21
    $region20: #{tpu_custom_call.1} parent=1 // pred_region
      %22 = vst [vmem:[#allocation2] sm:$0xff] 0.0
    $region21: #{tpu_custom_call.1} parent=1 // pred_fallthru
      _
    %s23 = smul.u32 0, 128
    %s24 = scalar_lea.vmem %s1, %s23
    %v25 = vld [vmem:[%s24] sm:$0xff]
    %v26 = vld [vmem:[%s24 + $0x8] sm:$0xff]
    %v27 = vld [vmem:[%s24 + $0x10] sm:$0xff]
    %v28 = vld [vmem:[%s24 + $0x18] sm:$0xff]
    %v29 = vld [vmem:[%s24 + $0x20] sm:$0xff]
    %v30 = vld [vmem:[%s24 + $0x28] sm:$0xff]
    %v31 = vld [vmem:[%s24 + $0x30] sm:$0xff]
    %v32 = vld [vmem:[%s24 + $0x38] sm:$0xff]
    %v33 = vld [vmem:[%s24 + $0x40] sm:$0xff]
    %v34 = vld [vmem:[%s24 + $0x48] sm:$0xff]
    %v35 = vld [vmem:[%s24 + $0x50] sm:$0xff]
    %v36 = vld [vmem:[%s24 + $0x58] sm:$0xff]
    %v37 = vld [vmem:[%s24 + $0x60] sm:$0xff]
    %v38 = vld [vmem:[%s24 + $0x68] sm:$0xff]
    %v39 = vld [vmem:[%s24 + $0x70] sm:$0xff]
    %v40 = vld [vmem:[%s24 + $0x78] sm:$0xff]
    %v41 = vld [vmem:[%s0] sm:$0xff]
    %v42 = vld [vmem:[%s0 + $0x8] sm:$0xff]
    %v43 = vld [vmem:[%s0 + $0x10] sm:$0xff]
    %v44 = vld [vmem:[%s0 + $0x18] sm:$0xff]
    %v45 = vld [vmem:[%s0 + $0x20] sm:$0xff]
    %v46 = vld [vmem:[%s0 + $0x28] sm:$0xff]
    %v47 = vld [vmem:[%s0 + $0x30] sm:$0xff]
    %v48 = vld [vmem:[%s0 + $0x38] sm:$0xff]
    %v49 = vld [vmem:[%s0 + $0x40] sm:$0xff]
    %v50 = vld [vmem:[%s0 + $0x48] sm:$0xff]
    %v51 = vld [vmem:[%s0 + $0x50] sm:$0xff]
    %v52 = vld [vmem:[%s0 + $0x58] sm:$0xff]
    %v53 = vld [vmem:[%s0 + $0x60] sm:$0xff]
    %v54 = vld [vmem:[%s0 + $0x68] sm:$0xff]
    %v55 = vld [vmem:[%s0 + $0x70] sm:$0xff]
    %v56 = vld [vmem:[%s0 + $0x78] sm:$0xff]
    %vm57 = vcmask 261120
    %v59 = vsel %vm57, %v41, 0
    %v62 = vsel %vm57, %v42, 0
    %v65 = vsel %vm57, %v43, 0
    %v68 = vsel %vm57, %v44, 0
    %v71 = vsel %vm57, %v45, 0
    %v74 = vsel %vm57, %v46, 0
    %v77 = vsel %vm57, %v47, 0
    %v80 = vsel %vm57, %v48, 0
    %v83 = vsel %vm57, %v49, 0
    %v86 = vsel %vm57, %v50, 0
    %v89 = vsel %vm57, %v51, 0
    %v92 = vsel %vm57, %v52, 0
    %v95 = vsel %vm57, %v53, 0
    %v98 = vsel %vm57, %v54, 0
    %v101 = vsel %vm57, %v55, 0
    %v104 = vsel %vm57, %v56, 0
    %v107 = vsel %vm57, %v25, 0
    %v110 = vsel %vm57, %v26, 0
    %v113 = vsel %vm57, %v27, 0
    %v116 = vsel %vm57, %v28, 0
    %v119 = vsel %vm57, %v29, 0
    %v122 = vsel %vm57, %v30, 0
    %v125 = vsel %vm57, %v31, 0
    %v128 = vsel %vm57, %v32, 0
    %v131 = vsel %vm57, %v33, 0
    %v134 = vsel %vm57, %v34, 0
    %v137 = vsel %vm57, %v35, 0
    %v140 = vsel %vm57, %v36, 0
    %v143 = vsel %vm57, %v37, 0
    %v146 = vsel %vm57, %v38, 0
    %v149 = vsel %vm57, %v39, 0
    %v152 = vsel %vm57, %v40, 0
    %154 = vmatprep.subr.mxu0 0.0
    %155 = vmatpush1.xpose.msra.mxu0 %v107
    %156 = vmatprep.subr.mxu0 0.0
    %157 = vmatpush1.xpose.msra.mxu0 %v110
    %158 = vmatprep.subr.mxu0 0.0
    %159 = vmatpush1.xpose.msra.mxu0 %v113
    %160 = vmatprep.subr.mxu0 0.0
    %161 = vmatpush1.xpose.msra.mxu0 %v116
    %162 = vmatprep.subr.mxu0 0.0
    %163 = vmatpush1.xpose.msra.mxu0 %v119
    %164 = vmatprep.subr.mxu0 0.0
    %165 = vmatpush1.xpose.msra.mxu0 %v122
    %166 = vmatprep.subr.mxu0 0.0
    %167 = vmatpush1.xpose.msra.mxu0 %v125
    %168 = vmatprep.subr.mxu0 0.0
    %169 = vmatpush1.xpose.msra.mxu0 %v128
    %170 = vmatprep.subr.mxu0 0.0
    %171 = vmatpush1.xpose.msra.mxu0 %v131
    %172 = vmatprep.subr.mxu0 0.0
    %173 = vmatpush1.xpose.msra.mxu0 %v134
    %174 = vmatprep.subr.mxu0 0.0
    %175 = vmatpush1.xpose.msra.mxu0 %v137
    %176 = vmatprep.subr.mxu0 0.0
    %177 = vmatpush1.xpose.msra.mxu0 %v140
    %178 = vmatprep.subr.mxu0 0.0
    %179 = vmatpush1.xpose.msra.mxu0 %v143
    %180 = vmatprep.subr.mxu0 0.0
    %181 = vmatpush1.xpose.msra.mxu0 %v146
    %182 = vmatprep.subr.mxu0 0.0
    %183 = vmatpush1.xpose.msra.mxu0 %v149
    %184 = vmatprep.subr.mxu0 0.0
    %185 = vmatpush1.xpose.msra.mxu0 %v152
    %186 = vmatprep.subr.mxu0 0.0
    %187 = vmatpush1.xpose.msra.mxu0 0.0
    %188 = vmatprep.subr.mxu0 0.0
    %189 = vmatpush1.xpose.msra.mxu0 0.0
    %190 = vmatprep.subr.mxu0 0.0
    %191 = vmatpush1.xpose.msra.mxu0 0.0
    %192 = vmatprep.subr.mxu0 0.0
    %193 = vmatpush1.xpose.msra.mxu0 0.0
    %194 = vmatprep.subr.mxu0 0.0
    %195 = vmatpush1.xpose.msra.mxu0 0.0
    %196 = vmatprep.subr.mxu0 0.0
    %197 = vmatpush1.xpose.msra.mxu0 0.0
    %198 = vmatprep.subr.mxu0 0.0
    %199 = vmatpush1.xpose.msra.mxu0 0.0
    %200 = vmatprep.subr.mxu0 0.0
    %201 = vmatpush1.xpose.msra.mxu0 0.0
    %202 = vmatprep.subr.mxu0 0.0
    %203 = vmatpush1.xpose.msra.mxu0 0.0
    %204 = vmatprep.subr.mxu0 0.0
    %205 = vmatpush1.xpose.msra.mxu0 0.0
    %206 = vmatprep.subr.mxu0 0.0
    %207 = vmatpush1.xpose.msra.mxu0 0.0
    %208 = vmatprep.subr.mxu0 0.0
    %209 = vmatpush1.xpose.msra.mxu0 0.0
    %210 = vmatprep.subr.mxu0 0.0
    %211 = vmatpush1.xpose.msra.mxu0 0.0
    %212 = vmatprep.subr.mxu0 0.0
    %213 = vmatpush1.xpose.msra.mxu0 0.0
    %214 = vmatprep.subr.mxu0 0.0
    %215 = vmatpush1.xpose.msra.mxu0 0.0
    %216 = vmatprep.subr.mxu0 0.0
    %217 = vmatpush1.xpose.msra.mxu0 0.0
    %218 = vmatprep.mubr.f32.mxu0 0.0
    %219 = vmatmul.mubr.f32.gmra.mrb[0].mxu0 %v59
    %v220 = vpop.f32.mrb[0].mxu0
    %v221 = vadd.f32 0.0, %v220
    %v222 = vpop.f32.mrb[0].mxu0
    %223 = vmatprep.mubr.f32.mxu0 0.0
    %224 = vmatmul.mubr.f32.gmra.mrb[0].mxu0 %v62
    %v225 = vpop.f32.mrb[0].mxu0
    %v226 = vadd.f32 0.0, %v225
    %v227 = vpop.f32.mrb[0].mxu0
    %228 = vmatprep.mubr.f32.mxu0 0.0
    %229 = vmatmul.mubr.f32.gmra.mrb[0].mxu0 %v65
    %v230 = vpop.f32.mrb[0].mxu0
    %v231 = vadd.f32 0.0, %v230
    %v232 = vpop.f32.mrb[0].mxu0
    %233 = vmatprep.mubr.f32.mxu0 0.0
    %234 = vmatmul.mubr.f32.gmra.mrb[0].mxu0 %v68
    %v235 = vpop.f32.mrb[0].mxu0
    %v236 = vadd.f32 0.0, %v235
    %v237 = vpop.f32.mrb[0].mxu0
    %238 = vmatprep.mubr.f32.mxu0 0.0
    %239 = vmatmul.mubr.f32.gmra.mrb[0].mxu0 %v71
    %v240 = vpop.f32.mrb[0].mxu0
    %v241 = vadd.f32 0.0, %v240
    %v242 = vpop.f32.mrb[0].mxu0
    %243 = vmatprep.mubr.f32.mxu0 0.0
    %244 = vmatmul.mubr.f32.gmra.mrb[0].mxu0 %v74
    %v245 = vpop.f32.mrb[0].mxu0
    %v246 = vadd.f32 0.0, %v245
    %v247 = vpop.f32.mrb[0].mxu0
    %248 = vmatprep.mubr.f32.mxu0 0.0
    %249 = vmatmul.mubr.f32.gmra.mrb[0].mxu0 %v77
    %v250 = vpop.f32.mrb[0].mxu0
    %v251 = vadd.f32 0.0, %v250
    %v252 = vpop.f32.mrb[0].mxu0
    %253 = vmatprep.mubr.f32.mxu0 0.0
    %254 = vmatmul.mubr.f32.gmra.mrb[0].mxu0 %v80
    %v255 = vpop.f32.mrb[0].mxu0
    %v256 = vadd.f32 0.0, %v255
    %v257 = vpop.f32.mrb[0].mxu0
    %258 = vmatprep.mubr.f32.mxu0 0.0
    %259 = vmatmul.mubr.f32.gmra.mrb[0].mxu0 %v83
    %v260 = vpop.f32.mrb[0].mxu0
    %v261 = vadd.f32 0.0, %v260
    %v262 = vpop.f32.mrb[0].mxu0
    %263 = vmatprep.mubr.f32.mxu0 0.0
    %264 = vmatmul.mubr.f32.gmra.mrb[0].mxu0 %v86
    %v265 = vpop.f32.mrb[0].mxu0
    %v266 = vadd.f32 0.0, %v265
    %v267 = vpop.f32.mrb[0].mxu0
    %268 = vmatprep.mubr.f32.mxu0 0.0
    %269 = vmatmul.mubr.f32.gmra.mrb[0].mxu0 %v89
    %v270 = vpop.f32.mrb[0].mxu0
    %v271 = vadd.f32 0.0, %v270
    %v272 = vpop.f32.mrb[0].mxu0
    %273 = vmatprep.mubr.f32.mxu0 0.0
    %274 = vmatmul.mubr.f32.gmra.mrb[0].mxu0 %v92
    %v275 = vpop.f32.mrb[0].mxu0
    %v276 = vadd.f32 0.0, %v275
    %v277 = vpop.f32.mrb[0].mxu0
    %278 = vmatprep.mubr.f32.mxu0 0.0
    %279 = vmatmul.mubr.f32.gmra.mrb[0].mxu0 %v95
    %v280 = vpop.f32.mrb[0].mxu0
    %v281 = vadd.f32 0.0, %v280
    %v282 = vpop.f32.mrb[0].mxu0
    %283 = vmatprep.mubr.f32.mxu0 0.0
    %284 = vmatmul.mubr.f32.gmra.mrb[0].mxu0 %v98
    %v285 = vpop.f32.mrb[0].mxu0
    %v286 = vadd.f32 0.0, %v285
    %v287 = vpop.f32.mrb[0].mxu0
    %288 = vmatprep.mubr.f32.mxu0 0.0
    %289 = vmatmul.mubr.f32.gmra.mrb[0].mxu0 %v101
    %v290 = vpop.f32.mrb[0].mxu0
    %v291 = vadd.f32 0.0, %v290
    %v292 = vpop.f32.mrb[0].mxu0
    %293 = vmatprep.mubr.f32.mxu0 0.0
    %294 = vmatmul.mubr.f32.gmra.mrb[0].mxu0 %v104
    %v295 = vpop.f32.mrb[0].mxu0
    %v296 = vadd.f32 0.0, %v295
    %v297 = vpop.f32.mrb[0].mxu0
    %298 = vdwg.mxu0
    %v299 = vld [vmem:[%s2] sm:$0xff]
    %v300 = vld [vmem:[%s2 + $0x8] sm:$0xff]
    %v301 = vld [vmem:[%s2 + $0x10] sm:$0xff]
    %v302 = vld [vmem:[%s2 + $0x18] sm:$0xff]
    %v303 = vld [vmem:[%s2 + $0x20] sm:$0xff]
    %v304 = vld [vmem:[%s2 + $0x28] sm:$0xff]
    %v305 = vld [vmem:[%s2 + $0x30] sm:$0xff]
    %v306 = vld [vmem:[%s2 + $0x38] sm:$0xff]
    %v307 = vld [vmem:[%s2 + $0x40] sm:$0xff]
    %v308 = vld [vmem:[%s2 + $0x48] sm:$0xff]
    %v309 = vld [vmem:[%s2 + $0x50] sm:$0xff]
    %v310 = vld [vmem:[%s2 + $0x58] sm:$0xff]
    %v311 = vld [vmem:[%s2 + $0x60] sm:$0xff]
    %v312 = vld [vmem:[%s2 + $0x68] sm:$0xff]
    %v313 = vld [vmem:[%s2 + $0x70] sm:$0xff]
    %v314 = vld [vmem:[%s2 + $0x78] sm:$0xff]
    %316 = vset.pattern.permute.xlu0 0
    %317 = vperm.xlu0 %316, %v299
    %v318 = vpop.permute.xlu0 %317
    %321 = vset.pattern.permute.xlu0 0
    %322 = vperm.xlu0 %321, %v300
    %v323 = vpop.permute.xlu0 %322
    %326 = vset.pattern.permute.xlu0 0
    %327 = vperm.xlu0 %326, %v301
    %v328 = vpop.permute.xlu0 %327
    %331 = vset.pattern.permute.xlu0 0
    %332 = vperm.xlu0 %331, %v302
    %v333 = vpop.permute.xlu0 %332
    %336 = vset.pattern.permute.xlu0 0
    %337 = vperm.xlu0 %336, %v303
    %v338 = vpop.permute.xlu0 %337
    %341 = vset.pattern.permute.xlu0 0
    %342 = vperm.xlu0 %341, %v304
    %v343 = vpop.permute.xlu0 %342
    %346 = vset.pattern.permute.xlu0 0
    %347 = vperm.xlu0 %346, %v305
    %v348 = vpop.permute.xlu0 %347
    %351 = vset.pattern.permute.xlu0 0
    %352 = vperm.xlu0 %351, %v306
    %v353 = vpop.permute.xlu0 %352
    %356 = vset.pattern.permute.xlu0 0
    %357 = vperm.xlu0 %356, %v307
    %v358 = vpop.permute.xlu0 %357
    %361 = vset.pattern.permute.xlu0 0
    %362 = vperm.xlu0 %361, %v308
    %v363 = vpop.permute.xlu0 %362
    %366 = vset.pattern.permute.xlu0 0
    %367 = vperm.xlu0 %366, %v309
    %v368 = vpop.permute.xlu0 %367
    %371 = vset.pattern.permute.xlu0 0
    %372 = vperm.xlu0 %371, %v310
    %v373 = vpop.permute.xlu0 %372
    %376 = vset.pattern.permute.xlu0 0
    %377 = vperm.xlu0 %376, %v311
    %v378 = vpop.permute.xlu0 %377
    %381 = vset.pattern.permute.xlu0 0
    %382 = vperm.xlu0 %381, %v312
    %v383 = vpop.permute.xlu0 %382
    %386 = vset.pattern.permute.xlu0 0
    %387 = vperm.xlu0 %386, %v313
    %v388 = vpop.permute.xlu0 %387
    %391 = vset.pattern.permute.xlu0 0
    %392 = vperm.xlu0 %391, %v314
    %v393 = vpop.permute.xlu0 %392
    %v395 = vadd.f32 %v318, %v221
    %v396 = vadd.f32 %v323, %v226
    %v397 = vadd.f32 %v328, %v231
    %v398 = vadd.f32 %v333, %v236
    %v399 = vadd.f32 %v338, %v241
    %v400 = vadd.f32 %v343, %v246
    %v401 = vadd.f32 %v348, %v251
    %v402 = vadd.f32 %v353, %v256
    %v403 = vadd.f32 %v358, %v261
    %v404 = vadd.f32 %v363, %v266
    %v405 = vadd.f32 %v368, %v271
    %v406 = vadd.f32 %v373, %v276
    %v407 = vadd.f32 %v378, %v281
    %v408 = vadd.f32 %v383, %v286
    %v409 = vadd.f32 %v388, %v291
    %v410 = vadd.f32 %v393, %v296
    %v411 = vmax.f32 %v395, 0.0
    %v412 = vmax.f32 %v396, 0.0
    %v413 = vmax.f32 %v397, 0.0
    %v414 = vmax.f32 %v398, 0.0
    %v415 = vmax.f32 %v399, 0.0
    %v416 = vmax.f32 %v400, 0.0
    %v417 = vmax.f32 %v401, 0.0
    %v418 = vmax.f32 %v402, 0.0
    %v419 = vmax.f32 %v403, 0.0
    %v420 = vmax.f32 %v404, 0.0
    %v421 = vmax.f32 %v405, 0.0
    %v422 = vmax.f32 %v406, 0.0
    %v423 = vmax.f32 %v407, 0.0
    %v424 = vmax.f32 %v408, 0.0
    %v425 = vmax.f32 %v409, 0.0
    %v426 = vmax.f32 %v410, 0.0
    %v427 = vld [vmem:[%s3] sm:$0x1]
    %v429 = vlaneseq
    %v430 = vshrl.u32 %v429, 7
    %v431 = vsub.s32 0, %v430
    %v432 = vrot.slane %v427, %v431
    %v434 = vadd.f32 %v432, %v221
    %v435 = vadd.f32 %v432, %v226
    %v436 = vadd.f32 %v432, %v231
    %v437 = vadd.f32 %v432, %v236
    %v438 = vadd.f32 %v432, %v241
    %v439 = vadd.f32 %v432, %v246
    %v440 = vadd.f32 %v432, %v251
    %v441 = vadd.f32 %v432, %v256
    %v442 = vadd.f32 %v432, %v261
    %v443 = vadd.f32 %v432, %v266
    %v444 = vadd.f32 %v432, %v271
    %v445 = vadd.f32 %v432, %v276
    %v446 = vadd.f32 %v432, %v281
    %v447 = vadd.f32 %v432, %v286
    %v448 = vadd.f32 %v432, %v291
    %v449 = vadd.f32 %v432, %v296
    %v450 = vmax.f32 %v434, 0.0
    %v451 = vmax.f32 %v435, 0.0
    %v452 = vmax.f32 %v436, 0.0
    %v453 = vmax.f32 %v437, 0.0
    %v454 = vmax.f32 %v438, 0.0
    %v455 = vmax.f32 %v439, 0.0
    %v456 = vmax.f32 %v440, 0.0
    %v457 = vmax.f32 %v441, 0.0
    %v458 = vmax.f32 %v442, 0.0
    %v459 = vmax.f32 %v443, 0.0
    %v460 = vmax.f32 %v444, 0.0
    %v461 = vmax.f32 %v445, 0.0
    %v462 = vmax.f32 %v446, 0.0
    %v463 = vmax.f32 %v447, 0.0
    %v464 = vmax.f32 %v448, 0.0
    %v465 = vmax.f32 %v449, 0.0
    %v466 = vadd.f32 %v411, %v450
    %v467 = vadd.f32 %v412, %v451
    %v468 = vadd.f32 %v413, %v452
    %v469 = vadd.f32 %v414, %v453
    %v470 = vadd.f32 %v415, %v454
    %v471 = vadd.f32 %v416, %v455
    %v472 = vadd.f32 %v417, %v456
    %v473 = vadd.f32 %v418, %v457
    %v474 = vadd.f32 %v419, %v458
    %v475 = vadd.f32 %v420, %v459
    %v476 = vadd.f32 %v421, %v460
    %v477 = vadd.f32 %v422, %v461
    %v478 = vadd.f32 %v423, %v462
    %v479 = vadd.f32 %v424, %v463
    %v480 = vadd.f32 %v425, %v464
    %v481 = vadd.f32 %v426, %v465
    %v482 = vadd.f32 %v466, %v467
    %v483 = vadd.f32 %v482, %v468
    %v484 = vadd.f32 %v483, %v469
    %v485 = vadd.f32 %v484, %v470
    %v486 = vadd.f32 %v485, %v471
    %v487 = vadd.f32 %v486, %v472
    %v488 = vadd.f32 %v487, %v473
    %v489 = vadd.f32 %v488, %v474
    %v490 = vadd.f32 %v489, %v475
    %v491 = vadd.f32 %v490, %v476
    %v492 = vadd.f32 %v491, %v477
    %v493 = vadd.f32 %v492, %v478
    %v494 = vadd.f32 %v493, %v479
    %v495 = vadd.f32 %v494, %v480
    %v496 = vadd.f32 %v495, %v481
    %v497 = vld [vmem:[#allocation2] sm:$0xff]
    %v498 = vadd.f32 %v497, %v496
    %499 = vst [vmem:[#allocation2] sm:$0xff] %v498
    // Predicated region
    $region22: #{tpu_custom_call.1} parent=1 // pred_check
      _
    $region23: #{tpu_custom_call.1} parent=1 // pred_check_branch
      %501 = sbr.rel (0) target = $region25
    $region24: #{tpu_custom_call.1} parent=1 // pred_region
      %s503 = ssub.s32 128, 128
      %504 = vsyncadd [#allocation3], %s503
      %s506 = sshll.u32 [#allocation2], 4
      %s507 = int_to_ptr.vmem [resolvable:$true] %s506
      %509 = dma.vmem_to_hbm [thread:$0]  %s507, 128, %s4, [#allocation3]
    $region25: #{tpu_custom_call.1} parent=1 // pred_fallthru
      _
    // Predicated region
    $region26: #{tpu_custom_call.1} parent=1 // pred_check
      _
    $region27: #{tpu_custom_call.1} parent=1 // pred_check_branch
      %511 = sbr.rel (0) target = $region29
    $region28: #{tpu_custom_call.1} parent=1 // pred_region
      %512 = dma.done [#allocation3], 128
    $region29: #{tpu_custom_call.1} parent=1 // pred_fallthru
      _
    %513 = vsyncpa [#allocation3], 1

</llo_original>
